<compile_context>
chip_gen: v6e
topology: v6e:2x2x1
jax: 0.10.0
libtpu: 0.0.40
codegen_flags: <defaults>
</compile_context>

<pallas_src>
import functools

import jax
import jax.numpy as jnp
from jax.experimental import pallas as pl
from jax.experimental.pallas import tpu as pltpu


_B_TILE = 8                    # images per grid step (sublane-aligned output rows)
_VMEM_BUDGET = 44 * 2 ** 20    # per-step working set must fit v7x's 64 MiB VMEM
_VMEM_LIMIT = 48 * 2 ** 20     # explicit scoped-VMEM cap (v5e default is only 16 MiB)


def _round_up(x, m):
    return (x + m - 1) // m * m


def _image_encoder_kernel(tok_ref, pool_ref, w_patch_ref, proj_ref, out_ref,
                          feat_scratch, *, inv_p):
    """Fused: token mean-pool (MXU) -> patch-embed matmul -> proj matmul.

    tok_ref      : (b_tile*P_pad, Dp_pad) bf16  all tokens of this step's images
    pool_ref     : (b_tile, b_tile*P_pad) bf16  constant block-diagonal 1.0 mask
    w_patch_ref  : (Dp_pad, W_pad)        bf16  stand-in `visual` patch-embed weight
    proj_ref     : (W_pad, E_pad)         bf16  ImageEncoder.proj (lane-padded)
    out_ref      : (b_tile, E_pad)        f32   lane-dense output block
    feat_scratch : (b_tile, W_pad)        f32   staged intermediate feature
    """
    # Per-image token sums on the MXU (rank reduction first => minimal FLOPs
    # downstream); the 1/P mean scale is applied in f32 (exact, no bf16 bias).
    tok_sum = jnp.dot(pool_ref[...], tok_ref[...],
                      preferred_element_type=jnp.float32)           # (b_tile, Dp_pad)
    pooled = (tok_sum * inv_p).astype(jnp.bfloat16)

    # Stand-in `visual` head (linear backbone => pool-before-matmul is exact).
    feat_scratch[...] = jnp.dot(pooled, w_patch_ref[...],
                                preferred_element_type=jnp.float32)  # (b_tile, W_pad)

    # feat @ self.proj  -> lane-dense padded output block.
    out_ref[...] = jnp.dot(feat_scratch[...].astype(jnp.bfloat16), proj_ref[...],
                           preferred_element_type=jnp.float32).astype(out_ref.dtype)


def patchify_nchw(x, patch):
    """x: (B, C, H, W) NCHW -> (B, num_patches, C*patch*patch)."""
    B, C, H, W = x.shape
    hp, wp = H // patch, W // patch
    t = x.reshape(B, C, hp, patch, wp, patch)
    t = jnp.transpose(t, (0, 2, 4, 1, 3, 5))          # (B, hp, wp, C, ph, pw)
    return t.reshape(B, hp * wp, C * patch * patch)


def _patchify_tokens(x, patch, b_pad, p_pad, dp_pad):
    """NCHW image -> zero-padded bf16 token slab (b_pad*p_pad, dp_pad).

    Transpose + bf16 cast + pad fuse into one XLA pass under jit, so the image
    data makes a single extra HBM round trip before the kernel streams it.
    """
    t = patchify_nchw(x, patch).astype(jnp.bfloat16)
    B, P, Dp = t.shape
    t = jnp.pad(t, ((0, b_pad - B), (0, p_pad - P), (0, dp_pad - Dp)))
    return t.reshape(b_pad * p_pad, dp_pad)


def image_encoder_forward(x_nchw, w_patch, proj, patch=4,
                          single_buffer_constants=True):
    B, C, H, Wimg = x_nchw.shape
    P = (H // patch) * (Wimg // patch)
    Dp = C * patch * patch
    W = w_patch.shape[1]
    E = proj.shape[1]

    b_tile = _B_TILE
    B_pad = _round_up(B, b_tile)
    P_pad = _round_up(P, 2)            # even -> 8*P_pad rows is a multiple of 16 (bf16)
    Dp_pad = _round_up(Dp, 128)        # lane-aligned contraction dim
    W_pad = _round_up(W, 128)
    E_pad = _round_up(E, 128)          # lane-dense output stores
    rows = b_tile * P_pad              # token rows per grid step (whole images)
    n_blocks = B_pad // b_tile

    # Per-generation VMEM budget (v7x: 64 MiB physical; v5e default scoped 16 MiB).
    const_copies = 1 if single_buffer_constants else 2
    vmem_est = (2 * rows * Dp_pad * 2                                   # token tile x2
                + const_copies * (b_tile * rows + Dp_pad * W_pad
                                  + W_pad * E_pad) * 2                  # constants
                + 2 * b_tile * E_pad * 4                                # output block
                + b_tile * W_pad * 4)                                   # feat scratch
    assert vmem_est <= _VMEM_BUDGET, (
        "whole-image tile exceeds the VMEM budget; chunk the token axis "
        "(see TODO(synk) at top of file)")

    tokens = _patchify_tokens(x_nchw, patch, B_pad, P_pad, Dp_pad)

    # Constant block-diagonal pooling mask: pool[i, j] = 1 iff token row j
    # belongs to image i of the 8-image block. 1.0 is exact in bf16; the 1/P
    # mean scale is applied in f32 inside the kernel.
    pool = (jnp.arange(rows, dtype=jnp.int32)[None, :] // P_pad
            == jnp.arange(b_tile, dtype=jnp.int32)[:, None]).astype(jnp.bfloat16)

    w_patch_p = jnp.pad(w_patch, ((0, Dp_pad - Dp),
                                  (0, W_pad - W))).astype(jnp.bfloat16)
    proj_p = jnp.pad(proj, ((0, W_pad - W),
                            (0, E_pad - E))).astype(jnp.bfloat16)

    const_mode = {}
    if single_buffer_constants:
        # Constant index_map -> the second pipeline buffer is pure VMEM waste.
        const_mode = dict(pipeline_mode=pl.Buffered(buffer_count=1))

    kernel = functools.partial(_image_encoder_kernel, inv_p=1.0 / P)

    flops = 2 * B_pad * (b_tile * P_pad * Dp_pad + Dp_pad * W_pad + W_pad * E_pad)
    bytes_accessed = int(tokens.size * 2 + pool.size * 2 + w_patch_p.size * 2
                         + proj_p.size * 2 + B_pad * E_pad * 4)

    out = pl.pallas_call(
        kernel,
        out_shape=jax.ShapeDtypeStruct((B_pad, E_pad), jnp.float32),
        grid_spec=pltpu.PrefetchScalarGridSpec(
            num_scalar_prefetch=0,
            grid=(n_blocks,),
            in_specs=[
                # Whole-image token tiles stream through VMEM (double-buffered).
                pl.BlockSpec((rows, Dp_pad), lambda b: (b, 0)),
                # Constant operands: resident, single-buffered.
                pl.BlockSpec((b_tile, rows), lambda b: (0, 0), **const_mode),
                pl.BlockSpec((Dp_pad, W_pad), lambda b: (0, 0), **const_mode),
                pl.BlockSpec((W_pad, E_pad), lambda b: (0, 0), **const_mode),
            ],
            out_specs=pl.BlockSpec((b_tile, E_pad), lambda b: (b, 0)),
            scratch_shapes=[pltpu.VMEM((b_tile, W_pad), jnp.float32)],
        ),
        compiler_params=pltpu.CompilerParams(
            # Each grid step handles disjoint images -> fully parallel
            # (v7x megacore sharding of the batch-block axis).
            dimension_semantics=("parallel",),
            vmem_limit_bytes=_VMEM_LIMIT,
        ),
        cost_estimate=pl.CostEstimate(
            flops=flops, transcendentals=0, bytes_accessed=bytes_accessed),
    )(tokens, pool, w_patch_p, proj_p)

    return out[:B, :E]


def reference_forward(x_nchw, w_patch, proj, patch=4):
    """Pure f32 reference in the original module order: visual(x) @ proj."""
    patches = patchify_nchw(x_nchw, patch).astype(jnp.float32)
    tok = jnp.einsum("bpd,dw->bpw", patches, w_patch.astype(jnp.float32))
    feat = tok.mean(axis=1)
    return feat @ proj.astype(jnp.float32)


if __name__ == "__main__":
    # Small shapes consistent with the module:
    #   batch=2, channels=4, spatial=16, patch=4 -> 16 patch tokens, Dp=64
    #   vision_width=32, embedding_num=8
    B, C, H, Wd = 2, 4, 16, 16
    patch = 4
    vision_width = 32
    embedding_num = 8
    patch_dim = C * patch * patch

    key = jax.random.PRNGKey(0)
    kx, kw, kp = jax.random.split(key, 3)

    x = jax.random.normal(kx, (B, C, H, Wd), dtype=jnp.float32)
    # Stand-in visual backbone parameter (patch-embedding weight).
    w_patch = (patch_dim ** -0.5) * jax.random.normal(
        kw, (patch_dim, vision_width), dtype=jnp.float32)
    # ImageEncoder.proj = scale * randn(vision_width, embedding_num)
    scale = vision_width ** -0.5
    proj = scale * jax.random.normal(
        kp, (vision_width, embedding_num), dtype=jnp.float32)

    fwd = jax.jit(functools.partial(image_encoder_forward, patch=patch))
    try:
        out = jax.block_until_ready(fwd(x, w_patch, proj))
    except Exception:
        # Fallback only differs in single-buffered constants (pl.Buffered(1));
        # any genuine kernel bug would fail here as well.
        fwd = jax.jit(functools.partial(image_encoder_forward, patch=patch,
                                        single_buffer_constants=False))
        out = jax.block_until_ready(fwd(x, w_patch, proj))

    ref = reference_forward(x, w_patch, proj, patch=patch)
    assert out.shape == (B, embedding_num)
    # bf16 MXU operands with f32 accumulation -> compare against the f32
    # module-order reference with a bf16-appropriate tolerance.
    assert jnp.allclose(out, ref, atol=2e-2, rtol=2e-2), "mismatch vs reference"

    print("KERNEL_OK")
</pallas_src>

<mosaic_0001>
module attributes {stable_mosaic.version = 11 : i64} {
  func.func @_image_encoder_kernel(%arg0: i32, %arg1: memref<128x128xbf16, #tpu.memory_space<vmem>>, %arg2: memref<8x128xbf16, #tpu.memory_space<vmem>>, %arg3: memref<128x128xbf16, #tpu.memory_space<vmem>>, %arg4: memref<128x128xbf16, #tpu.memory_space<vmem>>, %arg5: memref<8x128xf32, #tpu.memory_space<vmem>>, %arg6: memref<8x128xf32, #tpu.memory_space<vmem>>) attributes {dimension_semantics = [#tpu.dimension_semantics<parallel>], iteration_bounds = array<i64: 1>, scalar_prefetch = 0 : i64, scratch_operands = 1 : i64, tpu.core_type = #tpu.core_type<tc>, window_params = [{transform_indices = @transform_0, window_bounds = array<i64: 128, 128>}, {pipeline_mode = #tpu.pipeline_mode<synchronous>, transform_indices = @transform_1, window_bounds = array<i64: 8, 128>}, {pipeline_mode = #tpu.pipeline_mode<synchronous>, transform_indices = @transform_2, window_bounds = array<i64: 128, 128>}, {pipeline_mode = #tpu.pipeline_mode<synchronous>, transform_indices = @transform_3, window_bounds = array<i64: 128, 128>}, {transform_indices = @transform_4, window_bounds = array<i64: 8, 128>}]} {
    %c0 = arith.constant 0 : index
    %c0_0 = arith.constant 0 : index
    %0 = vector.load %arg2[%c0, %c0_0] : memref<8x128xbf16, #tpu.memory_space<vmem>>, vector<8x128xbf16>
    %c0_1 = arith.constant 0 : index
    %c0_2 = arith.constant 0 : index
    %1 = vector.load %arg1[%c0_1, %c0_2] : memref<128x128xbf16, #tpu.memory_space<vmem>>, vector<128x128xbf16>
    %cst = arith.constant dense<0.000000e+00> : vector<8x128xf32>
    %2 = tpu.matmul %0, %1, %cst {dimension_numbers = #tpu.dot_dimension_numbers<[1], [0], [0], [1], [0, 0, 1, 1], [], []>} : vector<8x128xbf16>, vector<128x128xbf16>, vector<8x128xf32> -> vector<8x128xf32>
    %cst_3 = arith.constant 6.250000e-02 : f32
    %3 = vector.broadcast %cst_3 : f32 to vector<8x128xf32>
    %4 = arith.mulf %2, %3 : vector<8x128xf32>
    %5 = arith.truncf %4 : vector<8x128xf32> to vector<8x128xbf16>
    %c0_4 = arith.constant 0 : index
    %c0_5 = arith.constant 0 : index
    %6 = vector.load %arg3[%c0_4, %c0_5] : memref<128x128xbf16, #tpu.memory_space<vmem>>, vector<128x128xbf16>
    %cst_6 = arith.constant dense<0.000000e+00> : vector<8x128xf32>
    %7 = tpu.matmul %5, %6, %cst_6 {dimension_numbers = #tpu.dot_dimension_numbers<[1], [0], [0], [1], [0, 0, 1, 1], [], []>} : vector<8x128xbf16>, vector<128x128xbf16>, vector<8x128xf32> -> vector<8x128xf32>
    %c0_7 = arith.constant 0 : index
    %c0_8 = arith.constant 0 : index
    %8 = vector.load %arg6[%c0_7, %c0_8] : memref<8x128xf32, #tpu.memory_space<vmem>>, vector<8x128xf32>
    tpu.vector_store %arg6[%c0_7, %c0_8], %7 {strides = array<i32>} : memref<8x128xf32, #tpu.memory_space<vmem>>, vector<8x128xf32>,
    %c0_9 = arith.constant 0 : index
    %c0_10 = arith.constant 0 : index
    %9 = vector.load %arg6[%c0_9, %c0_10] : memref<8x128xf32, #tpu.memory_space<vmem>>, vector<8x128xf32>
    %10 = arith.truncf %9 : vector<8x128xf32> to vector<8x128xbf16>
    %c0_11 = arith.constant 0 : index
    %c0_12 = arith.constant 0 : index
    %11 = vector.load %arg4[%c0_11, %c0_12] : memref<128x128xbf16, #tpu.memory_space<vmem>>, vector<128x128xbf16>
    %cst_13 = arith.constant dense<0.000000e+00> : vector<8x128xf32>
    %12 = tpu.matmul %10, %11, %cst_13 {dimension_numbers = #tpu.dot_dimension_numbers<[1], [0], [0], [1], [0, 0, 1, 1], [], []>} : vector<8x128xbf16>, vector<128x128xbf16>, vector<8x128xf32> -> vector<8x128xf32>
    %c0_14 = arith.constant 0 : index
    %c0_15 = arith.constant 0 : index
    %13 = vector.load %arg5[%c0_14, %c0_15] : memref<8x128xf32, #tpu.memory_space<vmem>>, vector<8x128xf32>
    tpu.vector_store %arg5[%c0_14, %c0_15], %12 {strides = array<i32>} : memref<8x128xf32, #tpu.memory_space<vmem>>, vector<8x128xf32>,
    return
  }
  func.func @transform_0(%arg0: i32) -> (i32, i32) {
    %c0_i32 = arith.constant 0 : i32
    %c0_i32_0 = arith.constant 0 : i32
    return %arg0, %c0_i32 : i32, i32
  }
  func.func @transform_1(%arg0: i32) -> (i32, i32) {
    %c0_i32 = arith.constant 0 : i32
    %c0_i32_0 = arith.constant 0 : i32
    %c0_i32_1 = arith.constant 0 : i32
    return %c0_i32, %c0_i32_0 : i32, i32
  }
  func.func @transform_2(%arg0: i32) -> (i32, i32) {
    %c0_i32 = arith.constant 0 : i32
    %c0_i32_0 = arith.constant 0 : i32
    %c0_i32_1 = arith.constant 0 : i32
    return %c0_i32, %c0_i32_0 : i32, i32
  }
  func.func @transform_3(%arg0: i32) -> (i32, i32) {
    %c0_i32 = arith.constant 0 : i32
    %c0_i32_0 = arith.constant 0 : i32
    %c0_i32_1 = arith.constant 0 : i32
    return %c0_i32, %c0_i32_0 : i32, i32
  }
  func.func @transform_4(%arg0: i32) -> (i32, i32) {
    %c0_i32 = arith.constant 0 : i32
    %c0_i32_0 = arith.constant 0 : i32
    return %arg0, %c0_i32 : i32, i32
  }
}

module attributes {stable_mosaic.version = 11 : i64} {
  func.func @_image_encoder_kernel(%arg0: i32, %arg1: memref<128x128xbf16, #tpu.memory_space<vmem>>, %arg2: memref<8x128xbf16, #tpu.memory_space<vmem>>, %arg3: memref<128x128xbf16, #tpu.memory_space<vmem>>, %arg4: memref<128x128xbf16, #tpu.memory_space<vmem>>, %arg5: memref<8x128xf32, #tpu.memory_space<vmem>>, %arg6: memref<8x128xf32, #tpu.memory_space<vmem>>) attributes {dimension_semantics = [#tpu.dimension_semantics<parallel>], iteration_bounds = array<i64: 1>, scalar_prefetch = 0 : i64, scratch_operands = 1 : i64, tpu.core_type = #tpu.core_type<tc>, window_params = [{transform_indices = @transform_0, window_bounds = array<i64: 128, 128>}, {pipeline_mode = #tpu.pipeline_mode<synchronous>, transform_indices = @transform_1, window_bounds = array<i64: 8, 128>}, {pipeline_mode = #tpu.pipeline_mode<synchronous>, transform_indices = @transform_2, window_bounds = array<i64: 128, 128>}, {pipeline_mode = #tpu.pipeline_mode<synchronous>, transform_indices = @transform_3, window_bounds = array<i64: 128, 128>}, {transform_indices = @transform_4, window_bounds = array<i64: 8, 128>}]} {
    %c0 = arith.constant 0 : index
    %c0_0 = arith.constant 0 : index
    %0 = vector.load %arg2[%c0, %c0_0] : memref<8x128xbf16, #tpu.memory_space<vmem>>, vector<8x128xbf16>
    %c0_1 = arith.constant 0 : index
    %c0_2 = arith.constant 0 : index
    %1 = vector.load %arg1[%c0_1, %c0_2] : memref<128x128xbf16, #tpu.memory_space<vmem>>, vector<128x128xbf16>
    %cst = arith.constant dense<0.000000e+00> : vector<8x128xf32>
    %2 = tpu.matmul %0, %1, %cst {dimension_numbers = #tpu.dot_dimension_numbers<[1], [0], [0], [1], [0, 0, 1, 1], [], []>} : vector<8x128xbf16>, vector<128x128xbf16>, vector<8x128xf32> -> vector<8x128xf32>
    %cst_3 = arith.constant 6.250000e-02 : f32
    %3 = vector.broadcast %cst_3 : f32 to vector<8x128xf32>
    %4 = arith.mulf %2, %3 : vector<8x128xf32>
    %5 = arith.truncf %4 : vector<8x128xf32> to vector<8x128xbf16>
    %c0_4 = arith.constant 0 : index
    %c0_5 = arith.constant 0 : index
    %6 = vector.load %arg3[%c0_4, %c0_5] : memref<128x128xbf16, #tpu.memory_space<vmem>>, vector<128x128xbf16>
    %cst_6 = arith.constant dense<0.000000e+00> : vector<8x128xf32>
    %7 = tpu.matmul %5, %6, %cst_6 {dimension_numbers = #tpu.dot_dimension_numbers<[1], [0], [0], [1], [0, 0, 1, 1], [], []>} : vector<8x128xbf16>, vector<128x128xbf16>, vector<8x128xf32> -> vector<8x128xf32>
    %c0_7 = arith.constant 0 : index
    %c0_8 = arith.constant 0 : index
    %8 = vector.load %arg6[%c0_7, %c0_8] : memref<8x128xf32, #tpu.memory_space<vmem>>, vector<8x128xf32>
    tpu.vector_store %arg6[%c0_7, %c0_8], %7 {strides = array<i32>} : memref<8x128xf32, #tpu.memory_space<vmem>>, vector<8x128xf32>,
    %c0_9 = arith.constant 0 : index
    %c0_10 = arith.constant 0 : index
    %9 = vector.load %arg6[%c0_9, %c0_10] : memref<8x128xf32, #tpu.memory_space<vmem>>, vector<8x128xf32>
    %10 = arith.truncf %9 : vector<8x128xf32> to vector<8x128xbf16>
    %c0_11 = arith.constant 0 : index
    %c0_12 = arith.constant 0 : index
    %11 = vector.load %arg4[%c0_11, %c0_12] : memref<128x128xbf16, #tpu.memory_space<vmem>>, vector<128x128xbf16>
    %cst_13 = arith.constant dense<0.000000e+00> : vector<8x128xf32>
    %12 = tpu.matmul %10, %11, %cst_13 {dimension_numbers = #tpu.dot_dimension_numbers<[1], [0], [0], [1], [0, 0, 1, 1], [], []>} : vector<8x128xbf16>, vector<128x128xbf16>, vector<8x128xf32> -> vector<8x128xf32>
    %c0_14 = arith.constant 0 : index
    %c0_15 = arith.constant 0 : index
    %13 = vector.load %arg5[%c0_14, %c0_15] : memref<8x128xf32, #tpu.memory_space<vmem>>, vector<8x128xf32>
    tpu.vector_store %arg5[%c0_14, %c0_15], %12 {strides = array<i32>} : memref<8x128xf32, #tpu.memory_space<vmem>>, vector<8x128xf32>,
    return
  }
  func.func @transform_0(%arg0: i32) -> (i32, i32) {
    %c0_i32 = arith.constant 0 : i32
    %c0_i32_0 = arith.constant 0 : i32
    return %arg0, %c0_i32 : i32, i32
  }
  func.func @transform_1(%arg0: i32) -> (i32, i32) {
    %c0_i32 = arith.constant 0 : i32
    %c0_i32_0 = arith.constant 0 : i32
    %c0_i32_1 = arith.constant 0 : i32
    return %c0_i32, %c0_i32_0 : i32, i32
  }
  func.func @transform_2(%arg0: i32) -> (i32, i32) {
    %c0_i32 = arith.constant 0 : i32
    %c0_i32_0 = arith.constant 0 : i32
    %c0_i32_1 = arith.constant 0 : i32
    return %c0_i32, %c0_i32_0 : i32, i32
  }
  func.func @transform_3(%arg0: i32) -> (i32, i32) {
    %c0_i32 = arith.constant 0 : i32
    %c0_i32_0 = arith.constant 0 : i32
    %c0_i32_1 = arith.constant 0 : i32
    return %c0_i32, %c0_i32_0 : i32, i32
  }
  func.func @transform_4(%arg0: i32) -> (i32, i32) {
    %c0_i32 = arith.constant 0 : i32
    %c0_i32_0 = arith.constant 0 : i32
    return %arg0, %c0_i32 : i32, i32
  }
}

</mosaic_0001>

<llo_original>
// kernel: image_encoder_forward.1
$region0: #{image_encoder_forward.1}
  #allocation0 [shape = 'u32[]', space=smem, size = 0x4, offset = 0x4, fixed_abs, tag = 'smem constant byte address 0x4 - core index']
  #allocation1 [shape = 'u32[144,128]{1,0:T(1,128)}', space=vmem, size = 0x12000, scoped, tag = 'internal scratch']
  #allocation2 [shape = 'f32[8,128]{1,0:T(8,128)}', space=vmem, size = 0x1000, scoped, tag = 'scratch operand']
  %s0 = inlined_call_operand.vmem [shape: bf16[128,128], index: 0, kind: input, shape index: {}]
  %s1 = inlined_call_operand.vmem [shape: bf16[8,128], index: 1, kind: input, shape index: {}]
  %s2 = inlined_call_operand.vmem [shape: bf16[128,128], index: 2, kind: input, shape index: {}]
  %s3 = inlined_call_operand.vmem [shape: bf16[128,128], index: 3, kind: input, shape index: {}]
  %s4 = inlined_call_operand.vmem [shape: f32[8,128], index: 4, kind: output, shape index: {}]
  %s5 = sld [smem:[#allocation0]]
  $region26: #{image_encoder_forward.1} parent=0
    _
  %s7 = ssub.s32 1, %s5
  %s8 = scalar_select 0, %s7, %s5
  // Predicated region
  $region2: #{image_encoder_forward.1} parent=0 // pred_check
    _
  $region3: #{image_encoder_forward.1} parent=0 // pred_check_branch
    %10 = sbr.rel (0) target = $region5
  $region4: #{image_encoder_forward.1} parent=0 // pred_region
    _
  $region5: #{image_encoder_forward.1} parent=0 // pred_fallthru
    _
  // Predicated region
  $region6: #{image_encoder_forward.1} parent=0 // pred_check
    _
  $region7: #{image_encoder_forward.1} parent=0 // pred_check_branch
    %12 = sbr.rel (0) target = $region9
  $region8: #{image_encoder_forward.1} parent=0 // pred_region
    _
  $region9: #{image_encoder_forward.1} parent=0 // pred_fallthru
    _
  // Predicated region
  $region10: #{image_encoder_forward.1} parent=0 // pred_check
    _
  $region11: #{image_encoder_forward.1} parent=0 // pred_check_branch
    %14 = sbr.rel (0) target = $region13
  $region12: #{image_encoder_forward.1} parent=0 // pred_region
    _
  $region13: #{image_encoder_forward.1} parent=0 // pred_fallthru
    _
  // Predicated region
  $region14: #{image_encoder_forward.1} parent=0 // pred_check
    _
  $region15: #{image_encoder_forward.1} parent=0 // pred_check_branch
    %16 = sbr.rel (0) target = $region17
  $region16: #{image_encoder_forward.1} parent=0 // pred_region
    _
  $region17: #{image_encoder_forward.1} parent=0 // pred_fallthru
    _
  %v18 = vld [vmem:[%s1] sm:$0xf]
  %v19 = vld [vmem:[%s0] sm:$0xf]
  %v20 = vld [vmem:[%s0 + $0x4] sm:$0xf]
  %v21 = vld [vmem:[%s0 + $0x8] sm:$0xf]
  %v22 = vld [vmem:[%s0 + $0xc] sm:$0xf]
  %v23 = vld [vmem:[%s0 + $0x10] sm:$0xf]
  %v24 = vld [vmem:[%s0 + $0x14] sm:$0xf]
  %v25 = vld [vmem:[%s0 + $0x18] sm:$0xf]
  %v26 = vld [vmem:[%s0 + $0x1c] sm:$0xf]
  %v27 = vld [vmem:[%s0 + $0x20] sm:$0xf]
  %v28 = vld [vmem:[%s0 + $0x24] sm:$0xf]
  %v29 = vld [vmem:[%s0 + $0x28] sm:$0xf]
  %v30 = vld [vmem:[%s0 + $0x2c] sm:$0xf]
  %v31 = vld [vmem:[%s0 + $0x30] sm:$0xf]
  %v32 = vld [vmem:[%s0 + $0x34] sm:$0xf]
  %v33 = vld [vmem:[%s0 + $0x38] sm:$0xf]
  %v34 = vld [vmem:[%s0 + $0x3c] sm:$0xf]
  %v51 = vunpack.c.l.b16 %v19
  %v52 = vunpack.c.l.b16 %v20
  %v53 = vunpack.c.l.b16 %v21
  %v54 = vunpack.c.l.b16 %v22
  %v55 = vunpack.c.l.b16 %v23
  %v56 = vunpack.c.l.b16 %v24
  %v57 = vunpack.c.l.b16 %v25
  %v58 = vunpack.c.l.b16 %v26
  %v59 = vunpack.c.l.b16 %v27
  %v60 = vunpack.c.l.b16 %v28
  %v61 = vunpack.c.l.b16 %v29
  %v62 = vunpack.c.l.b16 %v30
  %v63 = vunpack.c.l.b16 %v31
  %v64 = vunpack.c.l.b16 %v32
  %v65 = vunpack.c.l.b16 %v33
  %v66 = vunpack.c.l.b16 %v34
  %v67 = vpack.c.b16 %v52, %v51
  %v68 = vpack.c.b16 %v54, %v53
  %v69 = vpack.c.b16 %v56, %v55
  %v70 = vpack.c.b16 %v58, %v57
  %v71 = vpack.c.b16 %v60, %v59
  %v72 = vpack.c.b16 %v62, %v61
  %v73 = vpack.c.b16 %v64, %v63
  %v74 = vpack.c.b16 %v66, %v65
  %83 = vmatprep.subr.bf16.mxu0 0
  %84 = vmatpush1.bf16.msra.mxu0 %v74
  %85 = vmatprep.subr.bf16.mxu0 0
  %86 = vmatpush1.bf16.msra.mxu0 %v73
  %87 = vmatprep.subr.bf16.mxu0 0
  %88 = vmatpush1.bf16.msra.mxu0 %v72
  %89 = vmatprep.subr.bf16.mxu0 0
  %90 = vmatpush1.bf16.msra.mxu0 %v71
  %91 = vmatprep.subr.bf16.mxu0 0
  %92 = vmatpush1.bf16.msra.mxu0 %v70
  %93 = vmatprep.subr.bf16.mxu0 0
  %94 = vmatpush1.bf16.msra.mxu0 %v69
  %95 = vmatprep.subr.bf16.mxu0 0
  %96 = vmatpush1.bf16.msra.mxu0 %v68
  %97 = vmatprep.subr.bf16.mxu0 0
  %98 = vmatpush1.bf16.msra.mxu0 %v67
  %99 = vmatprep.subr.bf16.mxu0 0
  %100 = vmatpush2.bf16.msra.mxu0 0
  %101 = vmatprep.subr.bf16.mxu0 0
  %102 = vmatpush2.bf16.msra.mxu0 0
  %103 = vmatprep.subr.bf16.mxu0 0
  %104 = vmatpush2.bf16.msra.mxu0 0
  %105 = vmatprep.subr.bf16.mxu0 0
  %106 = vmatpush2.bf16.msra.mxu0 0
  %107 = vmatprep.subr.bf16.mxu0 0
  %108 = vmatpush2.bf16.msra.mxu0 0
  %109 = vmatprep.subr.bf16.mxu0 0
  %110 = vmatpush2.bf16.msra.mxu0 0
  %111 = vmatprep.subr.bf16.mxu0 0
  %112 = vmatpush2.bf16.msra.mxu0 0
  %113 = vmatprep.subr.bf16.mxu0 0
  %114 = vmatpush2.bf16.msra.mxu0 0
  %115 = vmatprep.mubr.bf16.mxu0 0
  %116 = vmatmul.mubr.bf16.gmra.mxu0 %v18
  %v117 = vpop.f32.mrf.mxu0
  %v118 = vadd.f32 0.0, %v117
  %v119 = vpop.f32.mrf.mxu0
  %v120 = vpop.f32.mrf.mxu0
  %v121 = vpop.f32.mrf.mxu0
  %122 = vdwg.mxu0
  %v123 = vmul.f32 %v118, 0.0625
  %v124 = vpack.c.bf16 %v123, %v123
  %v125 = vld [vmem:[%s2] sm:$0xf]
  %v126 = vld [vmem:[%s2 + $0x4] sm:$0xf]
  %v127 = vld [vmem:[%s2 + $0x8] sm:$0xf]
  %v128 = vld [vmem:[%s2 + $0xc] sm:$0xf]
  %v129 = vld [vmem:[%s2 + $0x10] sm:$0xf]
  %v130 = vld [vmem:[%s2 + $0x14] sm:$0xf]
  %v131 = vld [vmem:[%s2 + $0x18] sm:$0xf]
  %v132 = vld [vmem:[%s2 + $0x1c] sm:$0xf]
  %v133 = vld [vmem:[%s2 + $0x20] sm:$0xf]
  %v134 = vld [vmem:[%s2 + $0x24] sm:$0xf]
  %v135 = vld [vmem:[%s2 + $0x28] sm:$0xf]
  %v136 = vld [vmem:[%s2 + $0x2c] sm:$0xf]
  %v137 = vld [vmem:[%s2 + $0x30] sm:$0xf]
  %v138 = vld [vmem:[%s2 + $0x34] sm:$0xf]
  %v139 = vld [vmem:[%s2 + $0x38] sm:$0xf]
  %v140 = vld [vmem:[%s2 + $0x3c] sm:$0xf]
  %v157 = vunpack.c.l.b16 %v125
  %v158 = vunpack.c.l.b16 %v126
  %v159 = vunpack.c.l.b16 %v127
  %v160 = vunpack.c.l.b16 %v128
  %v161 = vunpack.c.l.b16 %v129
  %v162 = vunpack.c.l.b16 %v130
  %v163 = vunpack.c.l.b16 %v131
  %v164 = vunpack.c.l.b16 %v132
  %v165 = vunpack.c.l.b16 %v133
  %v166 = vunpack.c.l.b16 %v134
  %v167 = vunpack.c.l.b16 %v135
  %v168 = vunpack.c.l.b16 %v136
  %v169 = vunpack.c.l.b16 %v137
  %v170 = vunpack.c.l.b16 %v138
  %v171 = vunpack.c.l.b16 %v139
  %v172 = vunpack.c.l.b16 %v140
  %v173 = vpack.c.b16 %v158, %v157
  %v174 = vpack.c.b16 %v160, %v159
  %v175 = vpack.c.b16 %v162, %v161
  %v176 = vpack.c.b16 %v164, %v163
  %v177 = vpack.c.b16 %v166, %v165
  %v178 = vpack.c.b16 %v168, %v167
  %v179 = vpack.c.b16 %v170, %v169
  %v180 = vpack.c.b16 %v172, %v171
  %189 = vmatprep.subr.bf16.mxu0 0
  %190 = vmatpush1.bf16.msra.mxu0 %v180
  %191 = vmatprep.subr.bf16.mxu0 0
  %192 = vmatpush1.bf16.msra.mxu0 %v179
  %193 = vmatprep.subr.bf16.mxu0 0
  %194 = vmatpush1.bf16.msra.mxu0 %v178
  %195 = vmatprep.subr.bf16.mxu0 0
  %196 = vmatpush1.bf16.msra.mxu0 %v177
  %197 = vmatprep.subr.bf16.mxu0 0
  %198 = vmatpush1.bf16.msra.mxu0 %v176
  %199 = vmatprep.subr.bf16.mxu0 0
  %200 = vmatpush1.bf16.msra.mxu0 %v175
  %201 = vmatprep.subr.bf16.mxu0 0
  %202 = vmatpush1.bf16.msra.mxu0 %v174
  %203 = vmatprep.subr.bf16.mxu0 0
  %204 = vmatpush1.bf16.msra.mxu0 %v173
  %205 = vmatprep.subr.bf16.mxu0 0
  %206 = vmatpush2.bf16.msra.mxu0 0
  %207 = vmatprep.subr.bf16.mxu0 0
  %208 = vmatpush2.bf16.msra.mxu0 0
  %209 = vmatprep.subr.bf16.mxu0 0
  %210 = vmatpush2.bf16.msra.mxu0 0
  %211 = vmatprep.subr.bf16.mxu0 0
  %212 = vmatpush2.bf16.msra.mxu0 0
  %213 = vmatprep.subr.bf16.mxu0 0
  %214 = vmatpush2.bf16.msra.mxu0 0
  %215 = vmatprep.subr.bf16.mxu0 0
  %216 = vmatpush2.bf16.msra.mxu0 0
  %217 = vmatprep.subr.bf16.mxu0 0
  %218 = vmatpush2.bf16.msra.mxu0 0
  %219 = vmatprep.subr.bf16.mxu0 0
  %220 = vmatpush2.bf16.msra.mxu0 0
  %221 = vmatprep.mubr.bf16.mxu0 0
  %222 = vmatmul.mubr.bf16.gmra.mxu0 %v124
  %v223 = vpop.f32.mrf.mxu0
  %v224 = vadd.f32 0.0, %v223
  %v225 = vpop.f32.mrf.mxu0
  %v226 = vpop.f32.mrf.mxu0
  %v227 = vpop.f32.mrf.mxu0
  %228 = vdwg.mxu0
  %229 = vst [vmem:[#allocation2] sm:$0xff] %v224
  %v230 = vld [vmem:[#allocation2] sm:$0xff]
  %v231 = vpack.c.bf16 %v230, %v230
  %v232 = vld [vmem:[%s3] sm:$0xf]
  %v233 = vld [vmem:[%s3 + $0x4] sm:$0xf]
  %v234 = vld [vmem:[%s3 + $0x8] sm:$0xf]
  %v235 = vld [vmem:[%s3 + $0xc] sm:$0xf]
  %v236 = vld [vmem:[%s3 + $0x10] sm:$0xf]
  %v237 = vld [vmem:[%s3 + $0x14] sm:$0xf]
  %v238 = vld [vmem:[%s3 + $0x18] sm:$0xf]
  %v239 = vld [vmem:[%s3 + $0x1c] sm:$0xf]
  %v240 = vld [vmem:[%s3 + $0x20] sm:$0xf]
  %v241 = vld [vmem:[%s3 + $0x24] sm:$0xf]
  %v242 = vld [vmem:[%s3 + $0x28] sm:$0xf]
  %v243 = vld [vmem:[%s3 + $0x2c] sm:$0xf]
  %v244 = vld [vmem:[%s3 + $0x30] sm:$0xf]
  %v245 = vld [vmem:[%s3 + $0x34] sm:$0xf]
  %v246 = vld [vmem:[%s3 + $0x38] sm:$0xf]
  %v247 = vld [vmem:[%s3 + $0x3c] sm:$0xf]
  %v264 = vunpack.c.l.b16 %v232
  %v265 = vunpack.c.l.b16 %v233
  %v266 = vunpack.c.l.b16 %v234
  %v267 = vunpack.c.l.b16 %v235
  %v268 = vunpack.c.l.b16 %v236
  %v269 = vunpack.c.l.b16 %v237
  %v270 = vunpack.c.l.b16 %v238
  %v271 = vunpack.c.l.b16 %v239
  %v272 = vunpack.c.l.b16 %v240
  %v273 = vunpack.c.l.b16 %v241
  %v274 = vunpack.c.l.b16 %v242
  %v275 = vunpack.c.l.b16 %v243
  %v276 = vunpack.c.l.b16 %v244
  %v277 = vunpack.c.l.b16 %v245
  %v278 = vunpack.c.l.b16 %v246
  %v279 = vunpack.c.l.b16 %v247
  %v280 = vpack.c.b16 %v265, %v264
  %v281 = vpack.c.b16 %v267, %v266
  %v282 = vpack.c.b16 %v269, %v268
  %v283 = vpack.c.b16 %v271, %v270
  %v284 = vpack.c.b16 %v273, %v272
  %v285 = vpack.c.b16 %v275, %v274
  %v286 = vpack.c.b16 %v277, %v276
  %v287 = vpack.c.b16 %v279, %v278
  %296 = vmatprep.subr.bf16.mxu0 0
  %297 = vmatpush1.bf16.msra.mxu0 %v287
  %298 = vmatprep.subr.bf16.mxu0 0
  %299 = vmatpush1.bf16.msra.mxu0 %v286
  %300 = vmatprep.subr.bf16.mxu0 0
  %301 = vmatpush1.bf16.msra.mxu0 %v285
  %302 = vmatprep.subr.bf16.mxu0 0
  %303 = vmatpush1.bf16.msra.mxu0 %v284
  %304 = vmatprep.subr.bf16.mxu0 0
  %305 = vmatpush1.bf16.msra.mxu0 %v283
  %306 = vmatprep.subr.bf16.mxu0 0
  %307 = vmatpush1.bf16.msra.mxu0 %v282
  %308 = vmatprep.subr.bf16.mxu0 0
  %309 = vmatpush1.bf16.msra.mxu0 %v281
  %310 = vmatprep.subr.bf16.mxu0 0
  %311 = vmatpush1.bf16.msra.mxu0 %v280
  %312 = vmatprep.subr.bf16.mxu0 0
  %313 = vmatpush2.bf16.msra.mxu0 0
  %314 = vmatprep.subr.bf16.mxu0 0
  %315 = vmatpush2.bf16.msra.mxu0 0
  %316 = vmatprep.subr.bf16.mxu0 0
  %317 = vmatpush2.bf16.msra.mxu0 0
  %318 = vmatprep.subr.bf16.mxu0 0
  %319 = vmatpush2.bf16.msra.mxu0 0
  %320 = vmatprep.subr.bf16.mxu0 0
  %321 = vmatpush2.bf16.msra.mxu0 0
  %322 = vmatprep.subr.bf16.mxu0 0
  %323 = vmatpush2.bf16.msra.mxu0 0
  %324 = vmatprep.subr.bf16.mxu0 0
  %325 = vmatpush2.bf16.msra.mxu0 0
  %326 = vmatprep.subr.bf16.mxu0 0
  %327 = vmatpush2.bf16.msra.mxu0 0
  %328 = vmatprep.mubr.bf16.mxu0 0
  %329 = vmatmul.mubr.bf16.gmra.mxu0 %v231
  %v330 = vpop.f32.mrf.mxu0
  %v331 = vadd.f32 0.0, %v330
  %v332 = vpop.f32.mrf.mxu0
  %v333 = vpop.f32.mrf.mxu0
  %v334 = vpop.f32.mrf.mxu0
  %335 = vdwg.mxu0
  %336 = vst [vmem:[%s4] sm:$0xff] %v331
  // Predicated region
  $region18: #{image_encoder_forward.1} parent=0 // pred_check
    _
  $region19: #{image_encoder_forward.1} parent=0 // pred_check_branch
    %338 = sbr.rel (0) target = $region21
  $region20: #{image_encoder_forward.1} parent=0 // pred_region
    _
  $region21: #{image_encoder_forward.1} parent=0 // pred_fallthru
    _
  // Predicated region
  $region22: #{image_encoder_forward.1} parent=0 // pred_check
    _
  $region23: #{image_encoder_forward.1} parent=0 // pred_check_branch
    %340 = sbr.rel (0) target = $region25
  $region24: #{image_encoder_forward.1} parent=0 // pred_region
    _
  $region25: #{image_encoder_forward.1} parent=0 // pred_fallthru
    _

// kernel: image_encoder_forward.1
$region0: #{image_encoder_forward.1}
  #allocation0 [shape = 'u32[]', space=smem, size = 0x4, offset = 0x4, fixed_abs, tag = 'smem constant byte address 0x4 - core index']
  #allocation1 [shape = 'u32[144,128]{1,0:T(1,128)}', space=vmem, size = 0x12000, scoped, tag = 'internal scratch']
  #allocation2 [shape = 'f32[8,128]{1,0:T(8,128)}', space=vmem, size = 0x1000, scoped, tag = 'scratch operand']
  %s0 = inlined_call_operand.vmem [shape: bf16[128,128], index: 0, kind: input, shape index: {}]
  %s1 = inlined_call_operand.vmem [shape: bf16[8,128], index: 1, kind: input, shape index: {}]
  %s2 = inlined_call_operand.vmem [shape: bf16[128,128], index: 2, kind: input, shape index: {}]
  %s3 = inlined_call_operand.vmem [shape: bf16[128,128], index: 3, kind: input, shape index: {}]
  %s4 = inlined_call_operand.vmem [shape: f32[8,128], index: 4, kind: output, shape index: {}]
  %s5 = sld [smem:[#allocation0]]
  $region26: #{image_encoder_forward.1} parent=0
    _
  %s7 = ssub.s32 1, %s5
  %s8 = scalar_select 0, %s7, %s5
  // Predicated region
  $region2: #{image_encoder_forward.1} parent=0 // pred_check
    _
  $region3: #{image_encoder_forward.1} parent=0 // pred_check_branch
    %10 = sbr.rel (0) target = $region5
  $region4: #{image_encoder_forward.1} parent=0 // pred_region
    _
  $region5: #{image_encoder_forward.1} parent=0 // pred_fallthru
    _
  // Predicated region
  $region6: #{image_encoder_forward.1} parent=0 // pred_check
    _
  $region7: #{image_encoder_forward.1} parent=0 // pred_check_branch
    %12 = sbr.rel (0) target = $region9
  $region8: #{image_encoder_forward.1} parent=0 // pred_region
    _
  $region9: #{image_encoder_forward.1} parent=0 // pred_fallthru
    _
  // Predicated region
  $region10: #{image_encoder_forward.1} parent=0 // pred_check
    _
  $region11: #{image_encoder_forward.1} parent=0 // pred_check_branch
    %14 = sbr.rel (0) target = $region13
  $region12: #{image_encoder_forward.1} parent=0 // pred_region
    _
  $region13: #{image_encoder_forward.1} parent=0 // pred_fallthru
    _
  // Predicated region
  $region14: #{image_encoder_forward.1} parent=0 // pred_check
    _
  $region15: #{image_encoder_forward.1} parent=0 // pred_check_branch
    %16 = sbr.rel (0) target = $region17
  $region16: #{image_encoder_forward.1} parent=0 // pred_region
    _
  $region17: #{image_encoder_forward.1} parent=0 // pred_fallthru
    _
  %v18 = vld [vmem:[%s1] sm:$0xf]
  %v19 = vld [vmem:[%s0] sm:$0xf]
  %v20 = vld [vmem:[%s0 + $0x4] sm:$0xf]
  %v21 = vld [vmem:[%s0 + $0x8] sm:$0xf]
  %v22 = vld [vmem:[%s0 + $0xc] sm:$0xf]
  %v23 = vld [vmem:[%s0 + $0x10] sm:$0xf]
  %v24 = vld [vmem:[%s0 + $0x14] sm:$0xf]
  %v25 = vld [vmem:[%s0 + $0x18] sm:$0xf]
  %v26 = vld [vmem:[%s0 + $0x1c] sm:$0xf]
  %v27 = vld [vmem:[%s0 + $0x20] sm:$0xf]
  %v28 = vld [vmem:[%s0 + $0x24] sm:$0xf]
  %v29 = vld [vmem:[%s0 + $0x28] sm:$0xf]
  %v30 = vld [vmem:[%s0 + $0x2c] sm:$0xf]
  %v31 = vld [vmem:[%s0 + $0x30] sm:$0xf]
  %v32 = vld [vmem:[%s0 + $0x34] sm:$0xf]
  %v33 = vld [vmem:[%s0 + $0x38] sm:$0xf]
  %v34 = vld [vmem:[%s0 + $0x3c] sm:$0xf]
  %v51 = vunpack.c.l.b16 %v19
  %v52 = vunpack.c.l.b16 %v20
  %v53 = vunpack.c.l.b16 %v21
  %v54 = vunpack.c.l.b16 %v22
  %v55 = vunpack.c.l.b16 %v23
  %v56 = vunpack.c.l.b16 %v24
  %v57 = vunpack.c.l.b16 %v25
  %v58 = vunpack.c.l.b16 %v26
  %v59 = vunpack.c.l.b16 %v27
  %v60 = vunpack.c.l.b16 %v28
  %v61 = vunpack.c.l.b16 %v29
  %v62 = vunpack.c.l.b16 %v30
  %v63 = vunpack.c.l.b16 %v31
  %v64 = vunpack.c.l.b16 %v32
  %v65 = vunpack.c.l.b16 %v33
  %v66 = vunpack.c.l.b16 %v34
  %v67 = vpack.c.b16 %v52, %v51
  %v68 = vpack.c.b16 %v54, %v53
  %v69 = vpack.c.b16 %v56, %v55
  %v70 = vpack.c.b16 %v58, %v57
  %v71 = vpack.c.b16 %v60, %v59
  %v72 = vpack.c.b16 %v62, %v61
  %v73 = vpack.c.b16 %v64, %v63
  %v74 = vpack.c.b16 %v66, %v65
  %83 = vmatprep.subr.bf16.mxu0 0
  %84 = vmatpush1.bf16.msra.mxu0 %v74
  %85 = vmatprep.subr.bf16.mxu0 0
  %86 = vmatpush1.bf16.msra.mxu0 %v73
  %87 = vmatprep.subr.bf16.mxu0 0
  %88 = vmatpush1.bf16.msra.mxu0 %v72
  %89 = vmatprep.subr.bf16.mxu0 0
  %90 = vmatpush1.bf16.msra.mxu0 %v71
  %91 = vmatprep.subr.bf16.mxu0 0
  %92 = vmatpush1.bf16.msra.mxu0 %v70
  %93 = vmatprep.subr.bf16.mxu0 0
  %94 = vmatpush1.bf16.msra.mxu0 %v69
  %95 = vmatprep.subr.bf16.mxu0 0
  %96 = vmatpush1.bf16.msra.mxu0 %v68
  %97 = vmatprep.subr.bf16.mxu0 0
  %98 = vmatpush1.bf16.msra.mxu0 %v67
  %99 = vmatprep.subr.bf16.mxu0 0
  %100 = vmatpush2.bf16.msra.mxu0 0
  %101 = vmatprep.subr.bf16.mxu0 0
  %102 = vmatpush2.bf16.msra.mxu0 0
  %103 = vmatprep.subr.bf16.mxu0 0
  %104 = vmatpush2.bf16.msra.mxu0 0
  %105 = vmatprep.subr.bf16.mxu0 0
  %106 = vmatpush2.bf16.msra.mxu0 0
  %107 = vmatprep.subr.bf16.mxu0 0
  %108 = vmatpush2.bf16.msra.mxu0 0
  %109 = vmatprep.subr.bf16.mxu0 0
  %110 = vmatpush2.bf16.msra.mxu0 0
  %111 = vmatprep.subr.bf16.mxu0 0
  %112 = vmatpush2.bf16.msra.mxu0 0
  %113 = vmatprep.subr.bf16.mxu0 0
  %114 = vmatpush2.bf16.msra.mxu0 0
  %115 = vmatprep.mubr.bf16.mxu0 0
  %116 = vmatmul.mubr.bf16.gmra.mxu0 %v18
  %v117 = vpop.f32.mrf.mxu0
  %v118 = vadd.f32 0.0, %v117
  %v119 = vpop.f32.mrf.mxu0
  %v120 = vpop.f32.mrf.mxu0
  %v121 = vpop.f32.mrf.mxu0
  %122 = vdwg.mxu0
  %v123 = vmul.f32 %v118, 0.0625
  %v124 = vpack.c.bf16 %v123, %v123
  %v125 = vld [vmem:[%s2] sm:$0xf]
  %v126 = vld [vmem:[%s2 + $0x4] sm:$0xf]
  %v127 = vld [vmem:[%s2 + $0x8] sm:$0xf]
  %v128 = vld [vmem:[%s2 + $0xc] sm:$0xf]
  %v129 = vld [vmem:[%s2 + $0x10] sm:$0xf]
  %v130 = vld [vmem:[%s2 + $0x14] sm:$0xf]
  %v131 = vld [vmem:[%s2 + $0x18] sm:$0xf]
  %v132 = vld [vmem:[%s2 + $0x1c] sm:$0xf]
  %v133 = vld [vmem:[%s2 + $0x20] sm:$0xf]
  %v134 = vld [vmem:[%s2 + $0x24] sm:$0xf]
  %v135 = vld [vmem:[%s2 + $0x28] sm:$0xf]
  %v136 = vld [vmem:[%s2 + $0x2c] sm:$0xf]
  %v137 = vld [vmem:[%s2 + $0x30] sm:$0xf]
  %v138 = vld [vmem:[%s2 + $0x34] sm:$0xf]
  %v139 = vld [vmem:[%s2 + $0x38] sm:$0xf]
  %v140 = vld [vmem:[%s2 + $0x3c] sm:$0xf]
  %v157 = vunpack.c.l.b16 %v125
  %v158 = vunpack.c.l.b16 %v126
  %v159 = vunpack.c.l.b16 %v127
  %v160 = vunpack.c.l.b16 %v128
  %v161 = vunpack.c.l.b16 %v129
  %v162 = vunpack.c.l.b16 %v130
  %v163 = vunpack.c.l.b16 %v131
  %v164 = vunpack.c.l.b16 %v132
  %v165 = vunpack.c.l.b16 %v133
  %v166 = vunpack.c.l.b16 %v134
  %v167 = vunpack.c.l.b16 %v135
  %v168 = vunpack.c.l.b16 %v136
  %v169 = vunpack.c.l.b16 %v137
  %v170 = vunpack.c.l.b16 %v138
  %v171 = vunpack.c.l.b16 %v139
  %v172 = vunpack.c.l.b16 %v140
  %v173 = vpack.c.b16 %v158, %v157
  %v174 = vpack.c.b16 %v160, %v159
  %v175 = vpack.c.b16 %v162, %v161
  %v176 = vpack.c.b16 %v164, %v163
  %v177 = vpack.c.b16 %v166, %v165
  %v178 = vpack.c.b16 %v168, %v167
  %v179 = vpack.c.b16 %v170, %v169
  %v180 = vpack.c.b16 %v172, %v171
  %189 = vmatprep.subr.bf16.mxu0 0
  %190 = vmatpush1.bf16.msra.mxu0 %v180
  %191 = vmatprep.subr.bf16.mxu0 0
  %192 = vmatpush1.bf16.msra.mxu0 %v179
  %193 = vmatprep.subr.bf16.mxu0 0
  %194 = vmatpush1.bf16.msra.mxu0 %v178
  %195 = vmatprep.subr.bf16.mxu0 0
  %196 = vmatpush1.bf16.msra.mxu0 %v177
  %197 = vmatprep.subr.bf16.mxu0 0
  %198 = vmatpush1.bf16.msra.mxu0 %v176
  %199 = vmatprep.subr.bf16.mxu0 0
  %200 = vmatpush1.bf16.msra.mxu0 %v175
  %201 = vmatprep.subr.bf16.mxu0 0
  %202 = vmatpush1.bf16.msra.mxu0 %v174
  %203 = vmatprep.subr.bf16.mxu0 0
  %204 = vmatpush1.bf16.msra.mxu0 %v173
  %205 = vmatprep.subr.bf16.mxu0 0
  %206 = vmatpush2.bf16.msra.mxu0 0
  %207 = vmatprep.subr.bf16.mxu0 0
  %208 = vmatpush2.bf16.msra.mxu0 0
  %209 = vmatprep.subr.bf16.mxu0 0
  %210 = vmatpush2.bf16.msra.mxu0 0
  %211 = vmatprep.subr.bf16.mxu0 0
  %212 = vmatpush2.bf16.msra.mxu0 0
  %213 = vmatprep.subr.bf16.mxu0 0
  %214 = vmatpush2.bf16.msra.mxu0 0
  %215 = vmatprep.subr.bf16.mxu0 0
  %216 = vmatpush2.bf16.msra.mxu0 0
  %217 = vmatprep.subr.bf16.mxu0 0
  %218 = vmatpush2.bf16.msra.mxu0 0
  %219 = vmatprep.subr.bf16.mxu0 0
  %220 = vmatpush2.bf16.msra.mxu0 0
  %221 = vmatprep.mubr.bf16.mxu0 0
  %222 = vmatmul.mubr.bf16.gmra.mxu0 %v124
  %v223 = vpop.f32.mrf.mxu0
  %v224 = vadd.f32 0.0, %v223
  %v225 = vpop.f32.mrf.mxu0
  %v226 = vpop.f32.mrf.mxu0
  %v227 = vpop.f32.mrf.mxu0
  %228 = vdwg.mxu0
  %229 = vst [vmem:[#allocation2] sm:$0xff] %v224
  %v230 = vld [vmem:[#allocation2] sm:$0xff]
  %v231 = vpack.c.bf16 %v230, %v230
  %v232 = vld [vmem:[%s3] sm:$0xf]
  %v233 = vld [vmem:[%s3 + $0x4] sm:$0xf]
  %v234 = vld [vmem:[%s3 + $0x8] sm:$0xf]
  %v235 = vld [vmem:[%s3 + $0xc] sm:$0xf]
  %v236 = vld [vmem:[%s3 + $0x10] sm:$0xf]
  %v237 = vld [vmem:[%s3 + $0x14] sm:$0xf]
  %v238 = vld [vmem:[%s3 + $0x18] sm:$0xf]
  %v239 = vld [vmem:[%s3 + $0x1c] sm:$0xf]
  %v240 = vld [vmem:[%s3 + $0x20] sm:$0xf]
  %v241 = vld [vmem:[%s3 + $0x24] sm:$0xf]
  %v242 = vld [vmem:[%s3 + $0x28] sm:$0xf]
  %v243 = vld [vmem:[%s3 + $0x2c] sm:$0xf]
  %v244 = vld [vmem:[%s3 + $0x30] sm:$0xf]
  %v245 = vld [vmem:[%s3 + $0x34] sm:$0xf]
  %v246 = vld [vmem:[%s3 + $0x38] sm:$0xf]
  %v247 = vld [vmem:[%s3 + $0x3c] sm:$0xf]
  %v264 = vunpack.c.l.b16 %v232
  %v265 = vunpack.c.l.b16 %v233
  %v266 = vunpack.c.l.b16 %v234
  %v267 = vunpack.c.l.b16 %v235
  %v268 = vunpack.c.l.b16 %v236
  %v269 = vunpack.c.l.b16 %v237
  %v270 = vunpack.c.l.b16 %v238
  %v271 = vunpack.c.l.b16 %v239
  %v272 = vunpack.c.l.b16 %v240
  %v273 = vunpack.c.l.b16 %v241
  %v274 = vunpack.c.l.b16 %v242
  %v275 = vunpack.c.l.b16 %v243
  %v276 = vunpack.c.l.b16 %v244
  %v277 = vunpack.c.l.b16 %v245
  %v278 = vunpack.c.l.b16 %v246
  %v279 = vunpack.c.l.b16 %v247
  %v280 = vpack.c.b16 %v265, %v264
  %v281 = vpack.c.b16 %v267, %v266
  %v282 = vpack.c.b16 %v269, %v268
  %v283 = vpack.c.b16 %v271, %v270
  %v284 = vpack.c.b16 %v273, %v272
  %v285 = vpack.c.b16 %v275, %v274
  %v286 = vpack.c.b16 %v277, %v276
  %v287 = vpack.c.b16 %v279, %v278
  %296 = vmatprep.subr.bf16.mxu0 0
  %297 = vmatpush1.bf16.msra.mxu0 %v287
  %298 = vmatprep.subr.bf16.mxu0 0
  %299 = vmatpush1.bf16.msra.mxu0 %v286
  %300 = vmatprep.subr.bf16.mxu0 0
  %301 = vmatpush1.bf16.msra.mxu0 %v285
  %302 = vmatprep.subr.bf16.mxu0 0
  %303 = vmatpush1.bf16.msra.mxu0 %v284
  %304 = vmatprep.subr.bf16.mxu0 0
  %305 = vmatpush1.bf16.msra.mxu0 %v283
  %306 = vmatprep.subr.bf16.mxu0 0
  %307 = vmatpush1.bf16.msra.mxu0 %v282
  %308 = vmatprep.subr.bf16.mxu0 0
  %309 = vmatpush1.bf16.msra.mxu0 %v281
  %310 = vmatprep.subr.bf16.mxu0 0
  %311 = vmatpush1.bf16.msra.mxu0 %v280
  %312 = vmatprep.subr.bf16.mxu0 0
  %313 = vmatpush2.bf16.msra.mxu0 0
  %314 = vmatprep.subr.bf16.mxu0 0
  %315 = vmatpush2.bf16.msra.mxu0 0
  %316 = vmatprep.subr.bf16.mxu0 0
  %317 = vmatpush2.bf16.msra.mxu0 0
  %318 = vmatprep.subr.bf16.mxu0 0
  %319 = vmatpush2.bf16.msra.mxu0 0
  %320 = vmatprep.subr.bf16.mxu0 0
  %321 = vmatpush2.bf16.msra.mxu0 0
  %322 = vmatprep.subr.bf16.mxu0 0
  %323 = vmatpush2.bf16.msra.mxu0 0
  %324 = vmatprep.subr.bf16.mxu0 0
  %325 = vmatpush2.bf16.msra.mxu0 0
  %326 = vmatprep.subr.bf16.mxu0 0
  %327 = vmatpush2.bf16.msra.mxu0 0
  %328 = vmatprep.mubr.bf16.mxu0 0
  %329 = vmatmul.mubr.bf16.gmra.mxu0 %v231
  %v330 = vpop.f32.mrf.mxu0
  %v331 = vadd.f32 0.0, %v330
  %v332 = vpop.f32.mrf.mxu0
  %v333 = vpop.f32.mrf.mxu0
  %v334 = vpop.f32.mrf.mxu0
  %335 = vdwg.mxu0
  %336 = vst [vmem:[%s4] sm:$0xff] %v331
  // Predicated region
  $region18: #{image_encoder_forward.1} parent=0 // pred_check
    _
  $region19: #{image_encoder_forward.1} parent=0 // pred_check_branch
    %338 = sbr.rel (0) target = $region21
  $region20: #{image_encoder_forward.1} parent=0 // pred_region
    _
  $region21: #{image_encoder_forward.1} parent=0 // pred_fallthru
    _
  // Predicated region
  $region22: #{image_encoder_forward.1} parent=0 // pred_check
    _
  $region23: #{image_encoder_forward.1} parent=0 // pred_check_branch
    %340 = sbr.rel (0) target = $region25
  $region24: #{image_encoder_forward.1} parent=0 // pred_region
    _
  $region25: #{image_encoder_forward.1} parent=0 // pred_fallthru
    _

</llo_original>
